<compile_context>
chip_gen: v7x
topology: tpu7x:2x2x1
jax: 0.10.0
libtpu: 0.0.40
codegen_flags: <defaults>
</compile_context>

<pallas_src>
import functools
import numpy as np
import jax
import jax.numpy as jnp
from jax.experimental import pallas as pl
from jax.experimental.pallas import tpu as pltpu

# Scaled-down configuration (same structure as PARAMS, smaller channels).
CFG = dict(
    in_channels=32,      # PARAMS: 2048
    channels=16,         # PARAMS: 512
    dilations=(1, 12, 24, 36),
    c1_in_channels=16,   # PARAMS: 256
    c1_channels=8,       # PARAMS: 48
    num_classes=10,      # PARAMS: 66
)

_VMEM_LIMIT = 48 * 1024 * 1024   # explicit budget: below v7x's 64 MiB physical VMEM


def _cparams(sems):
    return pltpu.CompilerParams(dimension_semantics=sems,
                                vmem_limit_bytes=_VMEM_LIMIT)


def _pick_row_tile(M, cap=512):
    """Largest row tile (multiple of 8) dividing M; small M falls back to M."""
    for t in (cap, 256, 128, 64, 32, 16, 8):
        if t <= M and M % t == 0:
            return t
    return M


def _pick_col_tile(N, cap=2048):
    for t in (cap, 1024, 512, 256, 128):
        if t <= N and N % t == 0:
            return t
    return N


# ----------------------------------------------------------------------------
# Pallas kernels
# ----------------------------------------------------------------------------

def _mm_kernel(x_ref, w_ref, s_ref, b_ref, o_ref, *, relu):
    """(tm,K)@(K,N) bf16 matmul, f32 acc, * scale + bias (+ReLU)."""
    acc = jnp.dot(x_ref[...], w_ref[...], preferred_element_type=jnp.float32)
    acc = acc * s_ref[...] + b_ref[...]
    if relu:
        acc = jnp.maximum(acc, 0.0)
    o_ref[...] = acc.astype(o_ref.dtype)


def matmul_scale_bias(x, w, scale, bias, *, relu, out_dtype=jnp.bfloat16):
    x = x.astype(jnp.bfloat16)
    w = w.astype(jnp.bfloat16)
    scale = scale.astype(jnp.float32)
    bias = bias.astype(jnp.float32)
    M, K = x.shape
    N = w.shape[1]
    tm = _pick_row_tile(M)
    grid = (M // tm,)
    return pl.pallas_call(
        functools.partial(_mm_kernel, relu=relu),
        out_shape=jax.ShapeDtypeStruct((M, N), out_dtype),
        grid=grid,
        in_specs=[
            pl.BlockSpec((tm, K), lambda i: (i, 0)),
            pl.BlockSpec((K, N), lambda i: (0, 0)),
            pl.BlockSpec((1, N), lambda i: (0, 0)),
            pl.BlockSpec((1, N), lambda i: (0, 0)),
        ],
        out_specs=pl.BlockSpec((tm, N), lambda i: (i, 0)),
        compiler_params=_cparams(("parallel",)),
    )(x, w, scale, bias)


def conv1x1(x_nhwc, w, scale, bias, *, relu=True, out_dtype=jnp.bfloat16):
    Nb, H, W, Cin = x_nhwc.shape
    Cout = w.shape[1]
    y = matmul_scale_bias(x_nhwc.reshape(Nb * H * W, Cin), w, scale, bias,
                          relu=relu, out_dtype=out_dtype)
    return y.reshape(Nb, H, W, Cout)


def _tap_ranges(H, W, d):
    """Static valid in/out sub-rectangles per 3x3 tap; drops all-padding taps."""
    taps = []
    for i in range(3):
        for j in range(3):
            dy, dx = (i - 1) * d, (j - 1) * d
            oy0, oy1 = max(0, -dy), min(H, H - dy)
            ox0, ox1 = max(0, -dx), min(W, W - dx)
            if oy1 <= oy0 or ox1 <= ox0:
                continue  # tap reads only zero padding (e.g. dilation >= H)
            taps.append((i * 3 + j, oy0, oy1, ox0, ox1,
                         oy0 + dy, oy1 + dy, ox0 + dx, ox1 + dx))
    return tuple(taps)


def _sepconv_kernel(x_ref, dw_ref, s1_ref, b1_ref, pw_ref, s2_ref, b2_ref,
                    o_ref, acc_ref, *, taps, H, W):
    """Fused depthwise 3x3 (+BN+ReLU) -> pointwise 1x1 (+BN+ReLU), one image."""
    Cin = x_ref.shape[-1]
    Cout = o_ref.shape[-1]
    # Depthwise part (VPU), f32 accumulation in VMEM scratch, no padded copy.
    acc_ref[...] = jnp.zeros_like(acc_ref)
    for (t, oy0, oy1, ox0, ox1, iy0, iy1, ix0, ix1) in taps:
        acc_ref[0, oy0:oy1, ox0:ox1, :] += (
            x_ref[0, iy0:iy1, ix0:ix1, :].astype(jnp.float32)
            * dw_ref[t, :].astype(jnp.float32))
    dw = jnp.maximum(acc_ref[...] * s1_ref[...] + b1_ref[...], 0.0)
    # Pointwise part (MXU) directly from VMEM -- no HBM round trip.
    z = jnp.dot(dw.reshape(H * W, Cin).astype(jnp.bfloat16), pw_ref[...],
                preferred_element_type=jnp.float32)
    z = jnp.maximum(z * s2_ref[...] + b2_ref[...], 0.0)
    o_ref[...] = z.reshape(1, H, W, Cout).astype(o_ref.dtype)


def depthwise_separable_conv(x_nhwc, dw_w, dw_bn, pw_w, pw_bn, *, dilation,
                             out_dtype=jnp.bfloat16):
    Nb, H, W, Cin = x_nhwc.shape
    Cout = pw_w.shape[1]
    taps = _tap_ranges(H, W, dilation)
    s1, b1 = dw_bn
    s2, b2 = pw_bn
    return pl.pallas_call(
        functools.partial(_sepconv_kernel, taps=taps, H=H, W=W),
        out_shape=jax.ShapeDtypeStruct((Nb, H, W, Cout), out_dtype),
        grid=(Nb,),
        in_specs=[
            pl.BlockSpec((1, H, W, Cin), lambda b: (b, 0, 0, 0)),
            pl.BlockSpec((9, Cin), lambda b: (0, 0)),
            pl.BlockSpec((1, Cin), lambda b: (0, 0)),
            pl.BlockSpec((1, Cin), lambda b: (0, 0)),
            pl.BlockSpec((Cin, Cout), lambda b: (0, 0)),
            pl.BlockSpec((1, Cout), lambda b: (0, 0)),
            pl.BlockSpec((1, Cout), lambda b: (0, 0)),
        ],
        out_specs=pl.BlockSpec((1, H, W, Cout), lambda b: (b, 0, 0, 0)),
        scratch_shapes=[pltpu.VMEM((1, H, W, Cin), jnp.float32)],
        compiler_params=_cparams(("parallel",)),
    )(x_nhwc.astype(jnp.bfloat16), dw_w.astype(jnp.bfloat16),
      s1.astype(jnp.float32), b1.astype(jnp.float32),
      pw_w.astype(jnp.bfloat16),
      s2.astype(jnp.float32), b2.astype(jnp.float32))


def _bottleneck_kernel(*refs, H, W, n_branch):
    """3x3 conv over the virtual concat of n_branch inputs + BN + ReLU."""
    x_refs = refs[:n_branch]
    w_ref, s_ref, b_ref, o_ref, pad_ref = refs[n_branch:]
    Cc = x_refs[0].shape[-1]
    Cout = o_ref.shape[-1]
    pad_ref[...] = jnp.zeros_like(pad_ref)          # border stays zero
    acc = jnp.zeros((H * W, Cout), jnp.float32)
    for k in range(n_branch):
        pad_ref[0, 1:1 + H, 1:1 + W, :] = x_refs[k][0]
        for t in range(9):
            i, j = t // 3, t % 3
            tap = pad_ref[0, i:i + H, j:j + W, :].reshape(H * W, Cc)
            acc = acc + jnp.dot(tap, w_ref[k, t],
                                preferred_element_type=jnp.float32)
    acc = jnp.maximum(acc * s_ref[...] + b_ref[...], 0.0)
    o_ref[...] = acc.reshape(1, H, W, Cout).astype(o_ref.dtype)


def aspp_concat_bottleneck(branches, w9io, scale, bias, *, out_dtype=jnp.bfloat16):
    """Fuses torch.cat(aspp_outs) + 3x3 bottleneck conv into one kernel."""
    Nb, H, W, Cc = branches[0].shape
    Cout = w9io.shape[-1]
    nb_branch = len(branches)
    # (9, nb*Cc, Cout) -> (nb, 9, Cc, Cout): per-branch Cin chunks.
    w5 = jnp.transpose(w9io.reshape(9, nb_branch, Cc, Cout), (1, 0, 2, 3))
    return pl.pallas_call(
        functools.partial(_bottleneck_kernel, H=H, W=W, n_branch=nb_branch),
        out_shape=jax.ShapeDtypeStruct((Nb, H, W, Cout), out_dtype),
        grid=(Nb,),
        in_specs=(
            [pl.BlockSpec((1, H, W, Cc), lambda b: (b, 0, 0, 0))] * nb_branch
            + [pl.BlockSpec((nb_branch, 9, Cc, Cout), lambda b: (0, 0, 0, 0)),
               pl.BlockSpec((1, Cout), lambda b: (0, 0)),
               pl.BlockSpec((1, Cout), lambda b: (0, 0))]),
        out_specs=pl.BlockSpec((1, H, W, Cout), lambda b: (b, 0, 0, 0)),
        scratch_shapes=[pltpu.VMEM((1, H + 2, W + 2, Cc), jnp.bfloat16)],
        compiler_params=_cparams(("parallel",)),
    )(*[x.astype(jnp.bfloat16) for x in branches],
      w5.astype(jnp.bfloat16),
      scale.astype(jnp.float32), bias.astype(jnp.float32))


def _gap_kernel(x_ref, o_ref, *, inv_hw):
    @pl.when(pl.program_id(0) == 0)
    def _():
        o_ref[...] = jnp.zeros_like(o_ref)
    o_ref[...] += jnp.sum(x_ref[...].astype(jnp.float32), axis=1)
    @pl.when(pl.program_id(0) == pl.num_programs(0) - 1)
    def _():
        o_ref[...] = o_ref[...] * inv_hw


def global_avg_pool(x_nhwc):
    """Tiled global average pool: grid over H*W chunks, resident f32 output."""
    Nb, H, W, C = x_nhwc.shape
    HW = H * W
    xf = x_nhwc.reshape(Nb, HW, C).astype(jnp.bfloat16)
    thw = _pick_row_tile(HW)
    grid = (HW // thw,)
    return pl.pallas_call(
        functools.partial(_gap_kernel, inv_hw=1.0 / HW),
        out_shape=jax.ShapeDtypeStruct((Nb, C), jnp.float32),
        grid=grid,
        in_specs=[pl.BlockSpec((Nb, thw, C), lambda i: (0, i, 0))],
        out_specs=pl.BlockSpec((Nb, C), lambda i: (0, 0)),
        compiler_params=_cparams(("arbitrary",)),
    )(xf)


def _resize_mm_kernel(a_ref, x_ref, o_ref):
    o_ref[...] = jnp.dot(a_ref[...], x_ref[...],
                         preferred_element_type=jnp.float32).astype(o_ref.dtype)


def _resize_matmul(A, x):
    """Small f32 interpolation matmul, tiled over the (lane-dense) N axis."""
    M, K = A.shape
    N = x.shape[1]
    tn = _pick_col_tile(N)
    grid = (N // tn,)
    return pl.pallas_call(
        _resize_mm_kernel,
        out_shape=jax.ShapeDtypeStruct((M, N), jnp.float32),
        grid=grid,
        in_specs=[pl.BlockSpec((M, K), lambda j: (0, 0)),
                  pl.BlockSpec((K, tn), lambda j: (0, j))],
        out_specs=pl.BlockSpec((M, tn), lambda j: (0, j)),
        compiler_params=_cparams(("parallel",)),
    )(A, x)


# ----------------------------------------------------------------------------
# JAX glue (reshapes, resize matrices, parameter setup)
# ----------------------------------------------------------------------------

def _interp_matrix(out_size, in_size):
    """PyTorch F.interpolate bilinear (align_corners=False) as a matrix."""
    A = np.zeros((out_size, in_size), np.float32)
    if in_size == 1:
        A[:, 0] = 1.0
        return A
    scale = in_size / out_size
    for o in range(out_size):
        src = max((o + 0.5) * scale - 0.5, 0.0)
        x0 = min(int(np.floor(src)), in_size - 1)
        x1 = min(x0 + 1, in_size - 1)
        lam = src - x0
        A[o, x0] += 1.0 - lam
        A[o, x1] += lam
    return A


def bilinear_resize_nhwc(x_nhwc, out_hw, *, out_dtype=jnp.bfloat16):
    """Separable bilinear resize: two small matmuls (no kron blow-up)."""
    Nb, H0, W0, C = x_nhwc.shape
    H1, W1 = out_hw
    if (H1, W1) == (H0, W0):
        return x_nhwc.astype(out_dtype)
    xf = x_nhwc.astype(jnp.float32)
    Ah = jnp.asarray(_interp_matrix(H1, H0))
    Aw = jnp.asarray(_interp_matrix(W1, W0))
    # interpolate rows: (H1, H0) @ (H0, Nb*W0*C)
    xh = jnp.transpose(xf, (1, 0, 2, 3)).reshape(H0, Nb * W0 * C)
    y = _resize_matmul(Ah, xh).reshape(H1, Nb, W0, C)
    # interpolate cols: (W1, W0) @ (W0, H1*Nb*C)
    yw = jnp.transpose(y, (2, 0, 1, 3)).reshape(W0, H1 * Nb * C)
    z = _resize_matmul(Aw, yw).reshape(W1, H1, Nb, C)
    return jnp.transpose(z, (2, 1, 0, 3)).astype(out_dtype)


def cls_seg(x_nhwc, w, bias, num_classes):
    """1x1 conv + bias; classes padded to a lane-dense width, sliced after."""
    Nb, H, W, Cc = x_nhwc.shape
    n_pad = (-num_classes) % 128
    wp = jnp.pad(w, ((0, 0), (0, n_pad)))          # tiny weight-side pad only
    bp = jnp.pad(bias, ((0, 0), (0, n_pad)))
    ones = jnp.ones_like(bp)
    y = matmul_scale_bias(x_nhwc.reshape(Nb * H * W, Cc), wp, ones, bp,
                          relu=False, out_dtype=jnp.float32)
    return y[:, :num_classes].reshape(Nb, H, W, num_classes)


def bn_fold(key, C, eps=1e-5):
    k1, k2, k3, k4 = jax.random.split(key, 4)
    gamma = 1.0 + 0.1 * jax.random.normal(k1, (C,))
    beta = 0.1 * jax.random.normal(k2, (C,))
    mean = 0.1 * jax.random.normal(k3, (C,))
    var = jnp.abs(jax.random.normal(k4, (C,))) + 0.5
    scale = gamma / jnp.sqrt(var + eps)
    bias = beta - mean * scale
    return (scale.reshape(1, C).astype(jnp.float32),
            bias.reshape(1, C).astype(jnp.float32))


def init_params(key):
    ks = iter(jax.random.split(key, 64))
    def wmat(cin, cout):
        return (jax.random.normal(next(ks), (cin, cout)) / np.sqrt(cin)).astype(jnp.float32)
    def wdw(c):
        return (jax.random.normal(next(ks), (9, c)) / 3.0).astype(jnp.float32)
    def wconv3(cin, cout):
        return (jax.random.normal(next(ks), (9, cin, cout)) / np.sqrt(9 * cin)).astype(jnp.float32)

    Ci, Cc = CFG['in_channels'], CFG['channels']
    p = {}
    p['pool_w'] = wmat(Ci, Cc); p['pool_bn'] = bn_fold(next(ks), Cc)
    p['aspp'] = []
    for d in CFG['dilations']:
        if d == 1:
            p['aspp'].append(dict(d=1, w=wmat(Ci, Cc), bn=bn_fold(next(ks), Cc)))
        else:
            p['aspp'].append(dict(
                d=d,
                dw_w=wdw(Ci), dw_bn=bn_fold(next(ks), Ci),
                pw_w=wmat(Ci, Cc), pw_bn=bn_fold(next(ks), Cc)))
    p['bott_w'] = wconv3(5 * Cc, Cc); p['bott_bn'] = bn_fold(next(ks), Cc)
    p['c1_w'] = wmat(CFG['c1_in_channels'], CFG['c1_channels'])
    p['c1_bn'] = bn_fold(next(ks), CFG['c1_channels'])
    C0 = Cc + CFG['c1_channels']
    p['sep1_dw_w'] = wdw(C0); p['sep1_dw_bn'] = bn_fold(next(ks), C0)
    p['sep1_pw_w'] = wmat(C0, Cc); p['sep1_pw_bn'] = bn_fold(next(ks), Cc)
    p['sep2_dw_w'] = wdw(Cc); p['sep2_dw_bn'] = bn_fold(next(ks), Cc)
    p['sep2_pw_w'] = wmat(Cc, Cc); p['sep2_pw_bn'] = bn_fold(next(ks), Cc)
    p['seg_w'] = wmat(Cc, CFG['num_classes'])
    p['seg_b'] = (0.01 * jax.random.normal(next(ks), (1, CFG['num_classes']))).astype(jnp.float32)
    return p


def forward(params, inputs_nchw):
    """inputs_nchw: list of 4 multi-level features, NCHW. in_index = 3."""
    x = jnp.transpose(inputs_nchw[3], (0, 2, 3, 1)).astype(jnp.bfloat16)    # NHWC
    c1 = jnp.transpose(inputs_nchw[0], (0, 2, 3, 1)).astype(jnp.bfloat16)   # NHWC
    Nb, H, W, _ = x.shape
    Cc = CFG['channels']

    # image-pool branch: global avg pool -> 1x1 conv + BN + ReLU -> bilinear
    # resize of a 1x1 map == broadcast.
    pooled = global_avg_pool(x)                                            # (Nb, Ci) f32
    s, b = params['pool_bn']
    pooled = matmul_scale_bias(pooled, params['pool_w'], s, b, relu=True)  # (Nb, Cc) bf16
    branches = [jnp.broadcast_to(pooled[:, None, None, :], (Nb, H, W, Cc))]

    # ASPP branches (dilated ones fuse depthwise+pointwise in one kernel)
    for mod in params['aspp']:
        if mod['d'] == 1:
            s, b = mod['bn']
            branches.append(conv1x1(x, mod['w'], s, b, relu=True))
        else:
            branches.append(depthwise_separable_conv(
                x, mod['dw_w'], mod['dw_bn'], mod['pw_w'], mod['pw_bn'],
                dilation=mod['d']))

    # concat + 3x3 bottleneck fused (no (N,H,W,5*Cc) HBM tensor)
    s, b = params['bott_bn']
    out = aspp_concat_bottleneck(branches, params['bott_w'], s, b)         # (Nb,H,W,Cc)

    # c1 decoder branch
    s, b = params['c1_bn']
    c1_out = conv1x1(c1, params['c1_w'], s, b, relu=True)
    out = bilinear_resize_nhwc(out, c1_out.shape[1:3])
    out = jnp.concatenate([out, c1_out], axis=-1)

    # sep_bottleneck: two fused depthwise-separable conv modules
    out = depthwise_separable_conv(out, params['sep1_dw_w'], params['sep1_dw_bn'],
                                   params['sep1_pw_w'], params['sep1_pw_bn'], dilation=1)
    out = depthwise_separable_conv(out, params['sep2_dw_w'], params['sep2_dw_bn'],
                                   params['sep2_pw_w'], params['sep2_pw_bn'], dilation=1)

    # cls_seg: (dropout = identity in eval) + 1x1 conv with bias
    logits = cls_seg(out, params['seg_w'], params['seg_b'], CFG['num_classes'])
    return jnp.transpose(logits, (0, 3, 1, 2)).astype(jnp.float32)         # NCHW


if __name__ == "__main__":
    key = jax.random.PRNGKey(0)
    kp, k0, k1, k2, k3 = jax.random.split(key, 5)
    params = init_params(kp)
    Nb = 2
    inputs = [
        jax.random.normal(k0, (Nb, CFG['c1_in_channels'], 16, 16), jnp.float32),  # c1 (used)
        jax.random.normal(k1, (Nb, 24, 16, 16), jnp.float32),                     # unused level
        jax.random.normal(k2, (Nb, 28, 8, 8), jnp.float32),                       # unused level
        jax.random.normal(k3, (Nb, CFG['in_channels'], 8, 8), jnp.float32),       # in_index=3
    ]
    out = forward(params, inputs)
    out = jax.block_until_ready(out)
    assert out.shape == (Nb, CFG['num_classes'], 16, 16), out.shape
    assert bool(jnp.all(jnp.isfinite(out)))
    print("KERNEL_OK")
</pallas_src>

<mosaic_0001>
module attributes {stable_mosaic.version = 11 : i64} {
  func.func @_gap_kernel(%arg0: i32, %arg1: memref<2x64x32xbf16, #tpu.memory_space<vmem>>, %arg2: memref<2x32xf32, #tpu.memory_space<vmem>>) attributes {dimension_semantics = [#tpu.dimension_semantics<arbitrary>], iteration_bounds = array<i64: 1>, scalar_prefetch = 0 : i64, scratch_operands = 0 : i64, tpu.core_type = #tpu.core_type<tc>, window_params = [{transform_indices = @transform_0, window_bounds = array<i64: 2, 64, 32>}, {pipeline_mode = #tpu.pipeline_mode<synchronous>, transform_indices = @transform_1, window_bounds = array<i64: 2, 32>}]} {
    %c0_i32 = arith.constant 0 : i32
    %0 = arith.cmpi eq, %arg0, %c0_i32 : i32
    %1 = arith.extui %0 : i1 to i32
    %c0_i32_0 = arith.constant 0 : i32
    %2 = arith.cmpi ne, %1, %c0_i32_0 : i32
    scf.if %2 {
      %cst_9 = arith.constant 0.000000e+00 : f32
      %12 = vector.broadcast %cst_9 : f32 to vector<2x32xf32>
      %c0_10 = arith.constant 0 : index
      %c0_11 = arith.constant 0 : index
      %13 = vector.load %arg2[%c0_10, %c0_11] : memref<2x32xf32, #tpu.memory_space<vmem>>, vector<2x32xf32>
      tpu.vector_store %arg2[%c0_10, %c0_11], %12 {strides = array<i32>} : memref<2x32xf32, #tpu.memory_space<vmem>>, vector<2x32xf32>,
    } else {
    }
    %c0 = arith.constant 0 : index
    %c0_1 = arith.constant 0 : index
    %3 = vector.load %arg2[%c0, %c0_1] : memref<2x32xf32, #tpu.memory_space<vmem>>, vector<2x32xf32>
    %c0_2 = arith.constant 0 : index
    %c0_3 = arith.constant 0 : index
    %c0_4 = arith.constant 0 : index
    %4 = vector.load %arg1[%c0_2, %c0_3, %c0_4] : memref<2x64x32xbf16, #tpu.memory_space<vmem>>, vector<2x64x32xbf16>
    %5 = arith.extf %4 : vector<2x64x32xbf16> to vector<2x64x32xf32>
    %cst = arith.constant dense<0.000000e+00> : vector<2x32xf32>
    %6 = vector.multi_reduction <add>, %5, %cst [1] : vector<2x64x32xf32> to vector<2x32xf32>
    %7 = arith.addf %3, %6 : vector<2x32xf32>
    %c0_5 = arith.constant 0 : index
    %c0_6 = arith.constant 0 : index
    %8 = vector.load %arg2[%c0_5, %c0_6] : memref<2x32xf32, #tpu.memory_space<vmem>>, vector<2x32xf32>
    tpu.vector_store %arg2[%c0_5, %c0_6], %7 {strides = array<i32>} : memref<2x32xf32, #tpu.memory_space<vmem>>, vector<2x32xf32>,
    %c0_i32_7 = arith.constant 0 : i32
    %9 = arith.cmpi eq, %arg0, %c0_i32_7 : i32
    %10 = arith.extui %9 : i1 to i32
    %c0_i32_8 = arith.constant 0 : i32
    %11 = arith.cmpi ne, %10, %c0_i32_8 : i32
    scf.if %11 {
      %c0_9 = arith.constant 0 : index
      %c0_10 = arith.constant 0 : index
      %12 = vector.load %arg2[%c0_9, %c0_10] : memref<2x32xf32, #tpu.memory_space<vmem>>, vector<2x32xf32>
      %cst_11 = arith.constant 1.562500e-02 : f32
      %13 = vector.broadcast %cst_11 : f32 to vector<2x32xf32>
      %14 = arith.mulf %12, %13 : vector<2x32xf32>
      %c0_12 = arith.constant 0 : index
      %c0_13 = arith.constant 0 : index
      %15 = vector.load %arg2[%c0_12, %c0_13] : memref<2x32xf32, #tpu.memory_space<vmem>>, vector<2x32xf32>
      tpu.vector_store %arg2[%c0_12, %c0_13], %14 {strides = array<i32>} : memref<2x32xf32, #tpu.memory_space<vmem>>, vector<2x32xf32>,
    } else {
    }
    return
  }
  func.func @transform_0(%arg0: i32) -> (i32, i32, i32) {
    %c0_i32 = arith.constant 0 : i32
    %c0_i32_0 = arith.constant 0 : i32
    %c0_i32_1 = arith.constant 0 : i32
    return %c0_i32, %arg0, %c0_i32_0 : i32, i32, i32
  }
  func.func @transform_1(%arg0: i32) -> (i32, i32) {
    %c0_i32 = arith.constant 0 : i32
    %c0_i32_0 = arith.constant 0 : i32
    %c0_i32_1 = arith.constant 0 : i32
    return %c0_i32, %c0_i32_0 : i32, i32
  }
}

</mosaic_0001>

<llo_original>
// kernel: tpu_custom_call.1
$region0: #{tpu_custom_call.1}
  #allocation0 [shape = 'u32[]', space=smem, size = 0x4, offset = 0x4, fixed_abs, tag = 'smem constant byte address 0x4 - core index']
  #allocation1 [shape = 'u32[144,128]{1,0:T(1,128)}', space=vmem, size = 0x12000, scoped, tag = 'internal scratch']
  %s0 = inlined_call_operand.vmem [shape: bf16[2,64,32], index: 0, kind: input, shape index: {}]
  %s1 = inlined_call_operand.hbm [shape: f32[2,32], index: 1, kind: output, shape index: {}]
  %s2 = sld [smem:[#allocation0]]
  $region22: #{tpu_custom_call.1} parent=0
    _
  %s4 = ssub.s32 1, %s2
  %s5 = scalar_select 0, %s4, %s2
  $region1: #{tpu_custom_call.1} parent=0
    #allocation2 [shape = 'u8[1024]{0}', space=vmem, size = 0x400, scoped, tag = 'output window, operand 0, single buffered']
    #allocation3 [shape = 's32[1]{0}', space=sflag, size = 0x4, scoped, tag = 'scoped memory for tpu_custom_call.1']
    %6 = vsyncpa [#allocation3], 0
    // Predicated region
    $region2: #{tpu_custom_call.1} parent=1 // pred_check
      _
    $region3: #{tpu_custom_call.1} parent=1 // pred_check_branch
      %8 = sbr.rel (0) target = $region5
    $region4: #{tpu_custom_call.1} parent=1 // pred_region
      _
    $region5: #{tpu_custom_call.1} parent=1 // pred_fallthru
      _
    %p9 = scmp.eq.s32.totalorder 0, 0
    // Predicated region
    $region6: #{tpu_custom_call.1} parent=1 // pred_check
      %p10 = pneg %p9
    $region7: #{tpu_custom_call.1} parent=1 // pred_check_branch
      %12 = sbr.rel (%p10) target = $region9
    $region8: #{tpu_custom_call.1} parent=1 // pred_region
      %vm13 = vcmask 254976
      %14 = vst.msk [vmem:[#allocation2] sm:$0x3] %vm13, 0.0
    $region9: #{tpu_custom_call.1} parent=1 // pred_fallthru
      _
    %v15 = vld [vmem:[#allocation2] sm:$0x3]
    %v16 = vld [vmem:[%s0] sm:$0xf]
    %v17 = vld [vmem:[%s0 + $0x4] sm:$0xf]
    %v18 = vld [vmem:[%s0 + $0x8] sm:$0xf]
    %v19 = vld [vmem:[%s0 + $0xc] sm:$0xf]
    %v20 = vld [vmem:[%s0 + $0x10] sm:$0xf]
    %v21 = vld [vmem:[%s0 + $0x14] sm:$0xf]
    %v22 = vld [vmem:[%s0 + $0x18] sm:$0xf]
    %v23 = vld [vmem:[%s0 + $0x1c] sm:$0xf]
    %v24 = vld [vmem:[%s0 + $0x20] sm:$0xf]
    %v25 = vld [vmem:[%s0 + $0x24] sm:$0xf]
    %v26 = vld [vmem:[%s0 + $0x28] sm:$0xf]
    %v27 = vld [vmem:[%s0 + $0x2c] sm:$0xf]
    %v28 = vld [vmem:[%s0 + $0x30] sm:$0xf]
    %v29 = vld [vmem:[%s0 + $0x34] sm:$0xf]
    %v30 = vld [vmem:[%s0 + $0x38] sm:$0xf]
    %v31 = vld [vmem:[%s0 + $0x3c] sm:$0xf]
    %v32 = vunpack.c.l.bf16 %v16
    %v33 = vunpack.c.l.bf16 %v17
    %v34 = vunpack.c.l.bf16 %v18
    %v35 = vunpack.c.l.bf16 %v19
    %v36 = vunpack.c.l.bf16 %v20
    %v37 = vunpack.c.l.bf16 %v21
    %v38 = vunpack.c.l.bf16 %v22
    %v39 = vunpack.c.l.bf16 %v23
    %v40 = vunpack.c.l.bf16 %v24
    %v41 = vunpack.c.l.bf16 %v25
    %v42 = vunpack.c.l.bf16 %v26
    %v43 = vunpack.c.l.bf16 %v27
    %v44 = vunpack.c.l.bf16 %v28
    %v45 = vunpack.c.l.bf16 %v29
    %v46 = vunpack.c.l.bf16 %v30
    %v47 = vunpack.c.l.bf16 %v31
    %vm48 = vcmask 261120
    %v49 = vsel %vm48, %v32, 0.0
    %v50 = vsel %vm48, %v33, 0.0
    %v51 = vadd.f32 %v49, %v50
    %v52 = vsel %vm48, %v34, 0.0
    %v53 = vadd.f32 %v51, %v52
    %v54 = vsel %vm48, %v35, 0.0
    %v55 = vadd.f32 %v53, %v54
    %v56 = vsel %vm48, %v36, 0.0
    %v57 = vadd.f32 %v55, %v56
    %v58 = vsel %vm48, %v37, 0.0
    %v59 = vadd.f32 %v57, %v58
    %v60 = vsel %vm48, %v38, 0.0
    %v61 = vadd.f32 %v59, %v60
    %v62 = vsel %vm48, %v39, 0.0
    %v63 = vadd.f32 %v61, %v62
    %v64 = vrot.slane %v63, 4
    %v65 = vadd.f32 %v63, %v64
    %v66 = vrot.slane %v65, 2
    %v67 = vadd.f32 %v65, %v66
    %v68 = vrot.slane %v67, 1
    %v69 = vadd.f32 %v67, %v68
    %v70 = vsel %vm48, %v40, 0.0
    %v71 = vsel %vm48, %v41, 0.0
    %v72 = vadd.f32 %v70, %v71
    %v73 = vsel %vm48, %v42, 0.0
    %v74 = vadd.f32 %v72, %v73
    %v75 = vsel %vm48, %v43, 0.0
    %v76 = vadd.f32 %v74, %v75
    %v77 = vsel %vm48, %v44, 0.0
    %v78 = vadd.f32 %v76, %v77
    %v79 = vsel %vm48, %v45, 0.0
    %v80 = vadd.f32 %v78, %v79
    %v81 = vsel %vm48, %v46, 0.0
    %v82 = vadd.f32 %v80, %v81
    %v83 = vsel %vm48, %v47, 0.0
    %v84 = vadd.f32 %v82, %v83
    %v85 = vrot.slane %v84, 4
    %v86 = vadd.f32 %v84, %v85
    %v87 = vrot.slane %v86, 2
    %v88 = vadd.f32 %v86, %v87
    %v89 = vrot.slane %v88, 1
    %v90 = vadd.f32 %v88, %v89
    %vm93 = vcmask 1041409
    %v94 = vsel %vm93, %v90, %v69
    %v96 = vadd.f32 %v15, %v94
    %vm97 = vcmask 254976
    %98 = vst.msk [vmem:[#allocation2] sm:$0x3] %vm97, %v96
    // Predicated region
    $region10: #{tpu_custom_call.1} parent=1 // pred_check
      %p99 = pneg %p9
    $region11: #{tpu_custom_call.1} parent=1 // pred_check_branch
      %101 = sbr.rel (%p99) target = $region13
    $region12: #{tpu_custom_call.1} parent=1 // pred_region
      %v102 = vld [vmem:[#allocation2] sm:$0x3]
      %v103 = vmul.f32 %v102, 0.015625
      %104 = vst.msk [vmem:[#allocation2] sm:$0x3] %vm97, %v103
    $region13: #{tpu_custom_call.1} parent=1 // pred_fallthru
      _
    // Predicated region
    $region14: #{tpu_custom_call.1} parent=1 // pred_check
      _
    $region15: #{tpu_custom_call.1} parent=1 // pred_check_branch
      %106 = sbr.rel (0) target = $region17
    $region16: #{tpu_custom_call.1} parent=1 // pred_region
      %s108 = ssub.s32 32, 32
      %109 = vsyncadd [#allocation3], %s108
      %s111 = sshll.u32 [#allocation2], 4
      %s112 = int_to_ptr.vmem [resolvable:$true] %s111
      %114 = dma.vmem_to_hbm [thread:$0]  %s112, 32, %s1, [#allocation3]
    $region17: #{tpu_custom_call.1} parent=1 // pred_fallthru
      _
    // Predicated region
    $region18: #{tpu_custom_call.1} parent=1 // pred_check
      _
    $region19: #{tpu_custom_call.1} parent=1 // pred_check_branch
      %116 = sbr.rel (0) target = $region21
    $region20: #{tpu_custom_call.1} parent=1 // pred_region
      %117 = dma.done [#allocation3], 32
    $region21: #{tpu_custom_call.1} parent=1 // pred_fallthru
      _
    %118 = vsyncpa [#allocation3], 1

</llo_original>
